<compile_context>
chip_gen: v7x
topology: tpu7x:2x2x1
jax: 0.10.0
libtpu: 0.0.40
codegen_flags: <defaults>
</compile_context>

<pallas_src>
import jax
import jax.numpy as jnp
from jax.experimental import pallas as pl
from jax.experimental.pallas import tpu as pltpu


def vae_kernel(x_ref, wenc_ref, benc_ref, wout_ref, bout_ref, eps_ref,
               elbo_ref, z_ref, out_ref):
    x = x_ref[...]                                       # (B, x_dim) f32
    z_dim = eps_ref.shape[1]

    # --- encoder (fused mu / log_var matmul) --------------------------------
    enc = jnp.dot(x, wenc_ref[...],
                  preferred_element_type=jnp.float32) + benc_ref[...]  # (B, 2*z_dim)
    mu = enc[:, :z_dim]                                  # (B, z_dim)
    log_var = enc[:, z_dim:]                             # (B, z_dim)

    # --- reparameterization: z = mu + eps * exp(0.5 * log_var) --------------
    std = jnp.exp(0.5 * log_var)                         # single EUP exp pass
    z = mu + eps_ref[...] * std                          # (B, z_dim)

    # --- decoder -------------------------------------------------------------
    out = jnp.tanh(jnp.dot(z, wout_ref[...],
                           preferred_element_type=jnp.float32) + bout_ref[...])  # (B, x_dim)

    # --- losses --------------------------------------------------------------
    rec_loss = 0.5 * jnp.sum((out - x) ** 2)
    # exp(log_var) == std * std : reuse, no second exp pass.
    kld = -0.5 * jnp.sum(1.0 + log_var - mu * mu - std * std)

    elbo_ref[0, 0] = rec_loss + kld                      # scalar -> SMEM
    z_ref[...] = z
    out_ref[...] = out


def vae_forward(x, params, eps):
    """params: dict with pre-transposed weights (in, out) and biases (1, out)."""
    B, x_dim = x.shape
    z_dim = params["w_mu"].shape[1]

    # Fuse encoder weights/biases once at the wrapper level (negligible cost).
    w_enc = jnp.concatenate([params["w_mu"], params["w_lv"]], axis=1)  # (x_dim, 2*z_dim)
    b_enc = jnp.concatenate([params["b_mu"], params["b_lv"]], axis=1)  # (1, 2*z_dim)

    vmem = pltpu.MemorySpace.VMEM
    smem = pltpu.MemorySpace.SMEM

    in_specs = [pl.BlockSpec(memory_space=vmem)] * 6
    out_specs = (
        pl.BlockSpec(memory_space=smem),   # elbo (1, 1) scalar
        pl.BlockSpec(memory_space=vmem),   # z    (B, z_dim)
        pl.BlockSpec(memory_space=vmem),   # out  (B, x_dim)
    )

    f32 = jnp.dtype(jnp.float32).itemsize
    flops = (2 * B * x_dim * (2 * z_dim)      # fused encoder matmul
             + 2 * B * z_dim * x_dim          # decoder matmul
             + 12 * B * z_dim + 6 * B * x_dim)  # elementwise + loss (approx)
    transcendentals = B * z_dim + B * x_dim   # one exp pass + tanh
    bytes_accessed = f32 * (
        x.size + w_enc.size + b_enc.size
        + params["w_out"].size + params["b_out"].size + eps.size
        + 1 + B * z_dim + B * x_dim)

    elbo, z, out = pl.pallas_call(
        vae_kernel,
        out_shape=(
            jax.ShapeDtypeStruct((1, 1), jnp.float32),
            jax.ShapeDtypeStruct((B, z_dim), jnp.float32),
            jax.ShapeDtypeStruct((B, x_dim), jnp.float32),
        ),
        in_specs=in_specs,
        out_specs=out_specs,
        cost_estimate=pl.CostEstimate(
            flops=flops,
            transcendentals=transcendentals,
            bytes_accessed=bytes_accessed,
        ),
    )(x, w_enc, b_enc, params["w_out"], params["b_out"], eps)
    return elbo[0, 0], z, out


def init_params(key, x_dim, z_dim):
    """Deterministic nn.Linear-style init; weights stored as (in, out)."""
    ks = jax.random.split(key, 6)

    def linear(kw, kb, fan_in, fan_out):
        bound = 1.0 / jnp.sqrt(fan_in)
        w = jax.random.uniform(kw, (fan_in, fan_out), jnp.float32, -bound, bound)
        b = jax.random.uniform(kb, (1, fan_out), jnp.float32, -bound, bound)
        return w, b

    w_mu, b_mu = linear(ks[0], ks[1], x_dim, z_dim)
    w_lv, b_lv = linear(ks[2], ks[3], x_dim, z_dim)
    w_out, b_out = linear(ks[4], ks[5], z_dim, x_dim)
    return dict(w_mu=w_mu, b_mu=b_mu, w_lv=w_lv, b_lv=b_lv,
                w_out=w_out, b_out=b_out)


def vae_ref(x, p, eps):
    """Pure-JAX reference (unfused weights) for correctness check."""
    mu = x @ p["w_mu"] + p["b_mu"]
    log_var = x @ p["w_lv"] + p["b_lv"]
    z = mu + eps * jnp.exp(0.5 * log_var)
    out = jnp.tanh(z @ p["w_out"] + p["b_out"])
    rec = 0.5 * jnp.sum((out - x) ** 2)
    kld = -0.5 * jnp.sum(1.0 + log_var - mu ** 2 - jnp.exp(log_var))
    return rec + kld, z, out


if __name__ == "__main__":
    B, X_DIM, Z_DIM = 2, 16, 8

    key = jax.random.PRNGKey(0)
    k_x, k_eps, k_p = jax.random.split(key, 3)

    x = jax.random.normal(k_x, (B, X_DIM), jnp.float32)
    # torch.randn(mu.shape) in sample_z -> deterministic epsilon drawn here.
    eps = jax.random.normal(k_eps, (B, Z_DIM), jnp.float32)
    params = init_params(k_p, X_DIM, Z_DIM)

    elbo, z, out = vae_forward(x, params, eps)
    jax.block_until_ready((elbo, z, out))

    elbo_r, z_r, out_r = vae_ref(x, params, eps)
    assert jnp.allclose(elbo, elbo_r, rtol=1e-5, atol=1e-5)
    assert jnp.allclose(z, z_r, rtol=1e-5, atol=1e-5)
    assert jnp.allclose(out, out_r, rtol=1e-5, atol=1e-5)

    print("KERNEL_OK")
</pallas_src>

<mosaic_0001>
module attributes {stable_mosaic.version = 11 : i64} {
  func.func @vae_kernel(%arg0: memref<2x16xf32, #tpu.memory_space<vmem>>, %arg1: memref<16x16xf32, #tpu.memory_space<vmem>>, %arg2: memref<1x16xf32, #tpu.memory_space<vmem>>, %arg3: memref<8x16xf32, #tpu.memory_space<vmem>>, %arg4: memref<1x16xf32, #tpu.memory_space<vmem>>, %arg5: memref<2x8xf32, #tpu.memory_space<vmem>>, %arg6: memref<1x1xf32, #tpu.memory_space<smem>>, %arg7: memref<2x8xf32, #tpu.memory_space<vmem>>, %arg8: memref<2x16xf32, #tpu.memory_space<vmem>>) attributes {dimension_semantics = [], scalar_prefetch = 0 : i64, scratch_operands = 0 : i64, tpu.core_type = #tpu.core_type<tc>} {
    %c0 = arith.constant 0 : index
    %c0_0 = arith.constant 0 : index
    %0 = vector.load %arg0[%c0, %c0_0] : memref<2x16xf32, #tpu.memory_space<vmem>>, vector<2x16xf32>
    %c0_1 = arith.constant 0 : index
    %c0_2 = arith.constant 0 : index
    %1 = vector.load %arg1[%c0_1, %c0_2] : memref<16x16xf32, #tpu.memory_space<vmem>>, vector<16x16xf32>
    %cst = arith.constant dense<0.000000e+00> : vector<2x16xf32>
    %2 = tpu.matmul %0, %1, %cst {dimension_numbers = #tpu.dot_dimension_numbers<[1], [0], [0], [1], [0, 0, 1, 1], [], []>} : vector<2x16xf32>, vector<16x16xf32>, vector<2x16xf32> -> vector<2x16xf32>
    %c0_3 = arith.constant 0 : index
    %c0_4 = arith.constant 0 : index
    %3 = vector.load %arg2[%c0_3, %c0_4] : memref<1x16xf32, #tpu.memory_space<vmem>>, vector<1x16xf32>
    %4 = vector.broadcast %3 : vector<1x16xf32> to vector<2x16xf32>
    %5 = arith.addf %2, %4 : vector<2x16xf32>
    %6 = vector.extract_strided_slice %5 {offsets = [0, 0], sizes = [2, 8], strides = [1, 1]} : vector<2x16xf32> to vector<2x8xf32>
    %7 = vector.extract_strided_slice %5 {offsets = [0, 8], sizes = [2, 8], strides = [1, 1]} : vector<2x16xf32> to vector<2x8xf32>
    %cst_5 = arith.constant 5.000000e-01 : f32
    %8 = vector.broadcast %cst_5 : f32 to vector<2x8xf32>
    %9 = arith.mulf %8, %7 : vector<2x8xf32>
    %10 = math.exp %9 : vector<2x8xf32>
    %c0_6 = arith.constant 0 : index
    %c0_7 = arith.constant 0 : index
    %11 = vector.load %arg5[%c0_6, %c0_7] : memref<2x8xf32, #tpu.memory_space<vmem>>, vector<2x8xf32>
    %12 = arith.mulf %11, %10 : vector<2x8xf32>
    %13 = arith.addf %6, %12 : vector<2x8xf32>
    %c0_8 = arith.constant 0 : index
    %c0_9 = arith.constant 0 : index
    %14 = vector.load %arg3[%c0_8, %c0_9] : memref<8x16xf32, #tpu.memory_space<vmem>>, vector<8x16xf32>
    %cst_10 = arith.constant dense<0.000000e+00> : vector<2x16xf32>
    %15 = tpu.matmul %13, %14, %cst_10 {dimension_numbers = #tpu.dot_dimension_numbers<[1], [0], [0], [1], [0, 0, 1, 1], [], []>} : vector<2x8xf32>, vector<8x16xf32>, vector<2x16xf32> -> vector<2x16xf32>
    %c0_11 = arith.constant 0 : index
    %c0_12 = arith.constant 0 : index
    %16 = vector.load %arg4[%c0_11, %c0_12] : memref<1x16xf32, #tpu.memory_space<vmem>>, vector<1x16xf32>
    %17 = vector.broadcast %16 : vector<1x16xf32> to vector<2x16xf32>
    %18 = arith.addf %15, %17 : vector<2x16xf32>
    %19 = math.tanh %18 : vector<2x16xf32>
    %20 = arith.subf %19, %0 : vector<2x16xf32>
    %21 = arith.mulf %20, %20 : vector<2x16xf32>
    %22 = vector.shape_cast %21 : vector<2x16xf32> to vector<1x2x16xf32>
    %cst_13 = arith.constant dense<0.000000e+00> : vector<1xf32>
    %23 = vector.multi_reduction <add>, %22, %cst_13 [1, 2] : vector<1x2x16xf32> to vector<1xf32>
    %24 = vector.shape_cast %23 : vector<1xf32> to vector<1x1x1xf32>
    %25 = vector.extract %24[0, 0, 0] : f32 from vector<1x1x1xf32>
    %cst_14 = arith.constant 5.000000e-01 : f32
    %26 = arith.mulf %cst_14, %25 : f32
    %cst_15 = arith.constant 1.000000e+00 : f32
    %27 = vector.broadcast %cst_15 : f32 to vector<2x8xf32>
    %28 = arith.addf %27, %7 : vector<2x8xf32>
    %29 = arith.mulf %6, %6 : vector<2x8xf32>
    %30 = arith.subf %28, %29 : vector<2x8xf32>
    %31 = arith.mulf %10, %10 : vector<2x8xf32>
    %32 = arith.subf %30, %31 : vector<2x8xf32>
    %33 = vector.shape_cast %32 : vector<2x8xf32> to vector<1x2x8xf32>
    %cst_16 = arith.constant dense<0.000000e+00> : vector<1xf32>
    %34 = vector.multi_reduction <add>, %33, %cst_16 [1, 2] : vector<1x2x8xf32> to vector<1xf32>
    %35 = vector.shape_cast %34 : vector<1xf32> to vector<1x1x1xf32>
    %36 = vector.extract %35[0, 0, 0] : f32 from vector<1x1x1xf32>
    %cst_17 = arith.constant -5.000000e-01 : f32
    %37 = arith.mulf %cst_17, %36 : f32
    %38 = arith.addf %26, %37 : f32
    %c0_18 = arith.constant 0 : index
    %c0_19 = arith.constant 0 : index
    %39 = memref.load %arg6[%c0_18, %c0_19] : memref<1x1xf32, #tpu.memory_space<smem>>
    memref.store %38, %arg6[%c0_18, %c0_19] : memref<1x1xf32, #tpu.memory_space<smem>>
    %c0_20 = arith.constant 0 : index
    %c0_21 = arith.constant 0 : index
    %40 = vector.load %arg7[%c0_20, %c0_21] : memref<2x8xf32, #tpu.memory_space<vmem>>, vector<2x8xf32>
    tpu.vector_store %arg7[%c0_20, %c0_21], %13 {strides = array<i32>} : memref<2x8xf32, #tpu.memory_space<vmem>>, vector<2x8xf32>,
    %c0_22 = arith.constant 0 : index
    %c0_23 = arith.constant 0 : index
    %41 = vector.load %arg8[%c0_22, %c0_23] : memref<2x16xf32, #tpu.memory_space<vmem>>, vector<2x16xf32>
    tpu.vector_store %arg8[%c0_22, %c0_23], %19 {strides = array<i32>} : memref<2x16xf32, #tpu.memory_space<vmem>>, vector<2x16xf32>,
    return
  }
}

</mosaic_0001>

<llo_original>
// kernel: tpu_custom_call.1
$region0: #{tpu_custom_call.1}
  #allocation0 [shape = 'u32[]', space=smem, size = 0x4, offset = 0x4, fixed_abs, tag = 'smem constant byte address 0x4 - core index']
  #allocation1 [shape = 'u32[144,128]{1,0:T(1,128)}', space=vmem, size = 0x12000, scoped, tag = 'internal scratch']
  %s0 = inlined_call_operand.hbm [shape: f32[2,16], index: 0, kind: input, shape index: {}]
  %s1 = inlined_call_operand.hbm [shape: f32[16,16], index: 1, kind: input, shape index: {}]
  %s2 = inlined_call_operand.vmem [shape: f32[1,16], index: 2, kind: input, shape index: {}]
  %s3 = inlined_call_operand.vmem [shape: f32[8,16], index: 3, kind: input, shape index: {}]
  %s4 = inlined_call_operand.vmem [shape: f32[1,16], index: 4, kind: input, shape index: {}]
  %s5 = inlined_call_operand.vmem [shape: f32[2,8], index: 5, kind: input, shape index: {}]
  %s6 = inlined_call_operand.hbm [shape: f32[1,1], index: 6, kind: output, shape index: {0}]
  %s7 = inlined_call_operand.hbm [shape: f32[2,8], index: 7, kind: output, shape index: {1}]
  %s8 = inlined_call_operand.hbm [shape: f32[2,16], index: 8, kind: output, shape index: {2}]
  %9 = xla_tuple %s6, %s7, %s8
  %s10 = sld [smem:[#allocation0]]
  $region58: #{tpu_custom_call.1} parent=0
    _
  %s12 = ssub.s32 1, %s10
  %s13 = scalar_select 0, %s12, %s10
  $region1: #{tpu_custom_call.1} parent=0
    #allocation2 [shape = 'u8[1024]{0}', space=vmem, size = 0x400, scoped, tag = 'input window, operand 0, single buffered']
    #allocation3 [shape = 's32[1]{0}', space=sflag, size = 0x4, scoped, tag = 'scoped memory for tpu_custom_call.1']
    #allocation4 [shape = 's32[1]{0}', space=sflag, size = 0x4, scoped, tag = 'scoped memory for tpu_custom_call.1']
    #allocation5 [shape = 's32[1]{0}', space=sflag, size = 0x4, scoped, tag = 'scoped memory for tpu_custom_call.1']
    #allocation6 [shape = 'u8[8192]{0}', space=vmem, size = 0x2000, scoped, tag = 'input window, operand 1, single buffered']
    #allocation7 [shape = 's32[1]{0}', space=sflag, size = 0x4, scoped, tag = 'scoped memory for tpu_custom_call.1']
    #allocation8 [shape = 'u8[512]{0}', space=smem, size = 0x200, scoped, tag = 'output window, operand 0, single buffered']
    #allocation9 [shape = 'u8[1024]{0}', space=vmem, size = 0x400, scoped, tag = 'output window, operand 1, single buffered']
    #allocation10 [shape = 'u8[1024]{0}', space=vmem, size = 0x400, scoped, tag = 'output window, operand 2, single buffered']
    #allocation11 [shape = 's32[1]{0}', space=sflag, size = 0x4, scoped, tag = 'scoped memory for tpu_custom_call.1']
    %14 = vsyncpa [#allocation3], 0
    %15 = vsyncpa [#allocation7], 0
    %16 = vsyncpa [#allocation5], 0
    %17 = vsyncpa [#allocation4], 0
    %18 = vsyncpa [#allocation11], 0
    // Predicated region
    $region2: #{tpu_custom_call.1} parent=1 // pred_check
      _
    $region3: #{tpu_custom_call.1} parent=1 // pred_check_branch
      %20 = sbr.rel (0) target = $region5
    $region4: #{tpu_custom_call.1} parent=1 // pred_region
      %s22 = ssub.s32 32, 32
      %23 = vsyncadd [#allocation3], %s22
      %s25 = sshll.u32 [#allocation2], 4
      %s26 = int_to_ptr.vmem [resolvable:$true] %s25
      %28 = dma.hbm_to_vmem [thread:$0]  %s0, 32, %s26, [#allocation3]
    $region5: #{tpu_custom_call.1} parent=1 // pred_fallthru
      _
    // Predicated region
    $region6: #{tpu_custom_call.1} parent=1 // pred_check
      _
    $region7: #{tpu_custom_call.1} parent=1 // pred_check_branch
      %30 = sbr.rel (0) target = $region9
    $region8: #{tpu_custom_call.1} parent=1 // pred_region
      %s32 = ssub.s32 256, 256
      %33 = vsyncadd [#allocation7], %s32
      %s34 = sshll.u32 [#allocation6], 4
      %s35 = int_to_ptr.vmem [resolvable:$true] %s34
      %40 = dma.hbm_to_vmem [thread:$0]  %s1, 256, %s35, [#allocation7], 128, 128, 8
    $region9: #{tpu_custom_call.1} parent=1 // pred_fallthru
      _
    // Predicated region
    $region10: #{tpu_custom_call.1} parent=1 // pred_check
      _
    $region11: #{tpu_custom_call.1} parent=1 // pred_check_branch
      %42 = sbr.rel (0) target = $region13
    $region12: #{tpu_custom_call.1} parent=1 // pred_region
      _
    $region13: #{tpu_custom_call.1} parent=1 // pred_fallthru
      _
    // Predicated region
    $region14: #{tpu_custom_call.1} parent=1 // pred_check
      _
    $region15: #{tpu_custom_call.1} parent=1 // pred_check_branch
      %44 = sbr.rel (0) target = $region17
    $region16: #{tpu_custom_call.1} parent=1 // pred_region
      _
    $region17: #{tpu_custom_call.1} parent=1 // pred_fallthru
      _
    // Predicated region
    $region18: #{tpu_custom_call.1} parent=1 // pred_check
      _
    $region19: #{tpu_custom_call.1} parent=1 // pred_check_branch
      %46 = sbr.rel (0) target = $region21
    $region20: #{tpu_custom_call.1} parent=1 // pred_region
      _
    $region21: #{tpu_custom_call.1} parent=1 // pred_fallthru
      _
    // Predicated region
    $region22: #{tpu_custom_call.1} parent=1 // pred_check
      _
    $region23: #{tpu_custom_call.1} parent=1 // pred_check_branch
      %48 = sbr.rel (0) target = $region25
    $region24: #{tpu_custom_call.1} parent=1 // pred_region
      _
    $region25: #{tpu_custom_call.1} parent=1 // pred_fallthru
      _
    // Predicated region
    $region26: #{tpu_custom_call.1} parent=1 // pred_check
      _
    $region27: #{tpu_custom_call.1} parent=1 // pred_check_branch
      %50 = sbr.rel (0) target = $region29
    $region28: #{tpu_custom_call.1} parent=1 // pred_region
      %51 = dma.done [#allocation3], 32
    $region29: #{tpu_custom_call.1} parent=1 // pred_fallthru
      _
    // Predicated region
    $region30: #{tpu_custom_call.1} parent=1 // pred_check
      _
    $region31: #{tpu_custom_call.1} parent=1 // pred_check_branch
      %53 = sbr.rel (0) target = $region33
    $region32: #{tpu_custom_call.1} parent=1 // pred_region
      %54 = dma.done [#allocation7], 256
    $region33: #{tpu_custom_call.1} parent=1 // pred_fallthru
      _
    %v55 = vld [vmem:[#allocation2] sm:$0x3]
    %v56 = vld [vmem:[#allocation6] sm:$0xff]
    %v57 = vld [vmem:[#allocation6 + $0x8] sm:$0xff]
    %v58 = vld [vmem:[%s2] sm:$0x1]
    %v60 = vlaneseq
    %v61 = vshrl.u32 %v60, 7
    %v62 = vsub.s32 0, %v61
    %v63 = vrot.slane %v58, %v62
    %vm65 = vcmask 130048
    %v67 = vsel %vm65, %v55, 0
    %69 = vmatprep.subr.mxu0 0.0
    %70 = vmatpush1.msra.mxu0 %v56
    %71 = vmatprep.subr.mxu0 0.0
    %72 = vmatpush1.msra.mxu0 %v57
    %73 = vmatprep.subr.mxu0 0.0
    %74 = vmatpush1.msra.mxu0 0.0
    %75 = vmatprep.subr.mxu0 0.0
    %76 = vmatpush1.msra.mxu0 0.0
    %77 = vmatprep.subr.mxu0 0.0
    %78 = vmatpush1.msra.mxu0 0.0
    %79 = vmatprep.subr.mxu0 0.0
    %80 = vmatpush1.msra.mxu0 0.0
    %81 = vmatprep.subr.mxu0 0.0
    %82 = vmatpush1.msra.mxu0 0.0
    %83 = vmatprep.subr.mxu0 0.0
    %84 = vmatpush1.msra.mxu0 0.0
    %85 = vmatprep.subr.mxu0 0.0
    %86 = vmatpush1.msra.mxu0 0.0
    %87 = vmatprep.subr.mxu0 0.0
    %88 = vmatpush1.msra.mxu0 0.0
    %89 = vmatprep.subr.mxu0 0.0
    %90 = vmatpush1.msra.mxu0 0.0
    %91 = vmatprep.subr.mxu0 0.0
    %92 = vmatpush1.msra.mxu0 0.0
    %93 = vmatprep.subr.mxu0 0.0
    %94 = vmatpush1.msra.mxu0 0.0
    %95 = vmatprep.subr.mxu0 0.0
    %96 = vmatpush1.msra.mxu0 0.0
    %97 = vmatprep.subr.mxu0 0.0
    %98 = vmatpush1.msra.mxu0 0.0
    %99 = vmatprep.subr.mxu0 0.0
    %100 = vmatpush1.msra.mxu0 0.0
    %101 = vmatprep.subr.mxu0 0.0
    %102 = vmatpush1.msra.mxu0 0.0
    %103 = vmatprep.subr.mxu0 0.0
    %104 = vmatpush1.msra.mxu0 0.0
    %105 = vmatprep.subr.mxu0 0.0
    %106 = vmatpush1.msra.mxu0 0.0
    %107 = vmatprep.subr.mxu0 0.0
    %108 = vmatpush1.msra.mxu0 0.0
    %109 = vmatprep.subr.mxu0 0.0
    %110 = vmatpush1.msra.mxu0 0.0
    %111 = vmatprep.subr.mxu0 0.0
    %112 = vmatpush1.msra.mxu0 0.0
    %113 = vmatprep.subr.mxu0 0.0
    %114 = vmatpush1.msra.mxu0 0.0
    %115 = vmatprep.subr.mxu0 0.0
    %116 = vmatpush1.msra.mxu0 0.0
    %117 = vmatprep.subr.mxu0 0.0
    %118 = vmatpush1.msra.mxu0 0.0
    %119 = vmatprep.subr.mxu0 0.0
    %120 = vmatpush1.msra.mxu0 0.0
    %121 = vmatprep.subr.mxu0 0.0
    %122 = vmatpush1.msra.mxu0 0.0
    %123 = vmatprep.subr.mxu0 0.0
    %124 = vmatpush1.msra.mxu0 0.0
    %125 = vmatprep.subr.mxu0 0.0
    %126 = vmatpush1.msra.mxu0 0.0
    %127 = vmatprep.subr.mxu0 0.0
    %128 = vmatpush1.msra.mxu0 0.0
    %129 = vmatprep.subr.mxu0 0.0
    %130 = vmatpush1.msra.mxu0 0.0
    %131 = vmatprep.subr.mxu0 0.0
    %132 = vmatpush1.msra.mxu0 0.0
    %133 = vmatprep.mubr.f32.mxu0 0.0
    %134 = vmatmul.mubr.f32.gmra.mrb[0].mxu0 %v67
    %v135 = vpop.f32.mrb[0].mxu0
    %v136 = vadd.f32 %v63, %v135
    %v137 = vpop.f32.mrb[0].mxu0
    %138 = vdwg.mxu0
    %v139 = vmul.f32 %v136, 0.5
    %v140 = vmul.f32 %v139, 1.442695
    %v141 = vpow.pop %v140
    %v142 = vld [vmem:[%s5] sm:$0x3]
    %144 = vrot.lane.b32.xlu0 %v141, 120
    %v145 = vpop.permute.xlu0 %144
    %v147 = vmul.f32 %v142, %v145
    %v148 = vadd.f32 %v136, %v147
    %v149 = vld [vmem:[%s3] sm:$0xff]
    %v150 = vld [vmem:[%s4] sm:$0x1]
    %v152 = vlaneseq
    %v153 = vshrl.u32 %v152, 7
    %v154 = vsub.s32 0, %v153
    %v155 = vrot.slane %v150, %v154
    %vm157 = vcmask 64512
    %v159 = vsel %vm157, %v148, 0
    %161 = vmatprep.subr.mxu0 0.0
    %162 = vmatpush1.msra.mxu0 %v149
    %163 = vmatprep.subr.mxu0 0.0
    %164 = vmatpush1.msra.mxu0 0.0
    %165 = vmatprep.subr.mxu0 0.0
    %166 = vmatpush1.msra.mxu0 0.0
    %167 = vmatprep.subr.mxu0 0.0
    %168 = vmatpush1.msra.mxu0 0.0
    %169 = vmatprep.subr.mxu0 0.0
    %170 = vmatpush1.msra.mxu0 0.0
    %171 = vmatprep.subr.mxu0 0.0
    %172 = vmatpush1.msra.mxu0 0.0
    %173 = vmatprep.subr.mxu0 0.0
    %174 = vmatpush1.msra.mxu0 0.0
    %175 = vmatprep.subr.mxu0 0.0
    %176 = vmatpush1.msra.mxu0 0.0
    %177 = vmatprep.subr.mxu0 0.0
    %178 = vmatpush1.msra.mxu0 0.0
    %179 = vmatprep.subr.mxu0 0.0
    %180 = vmatpush1.msra.mxu0 0.0
    %181 = vmatprep.subr.mxu0 0.0
    %182 = vmatpush1.msra.mxu0 0.0
    %183 = vmatprep.subr.mxu0 0.0
    %184 = vmatpush1.msra.mxu0 0.0
    %185 = vmatprep.subr.mxu0 0.0
    %186 = vmatpush1.msra.mxu0 0.0
    %187 = vmatprep.subr.mxu0 0.0
    %188 = vmatpush1.msra.mxu0 0.0
    %189 = vmatprep.subr.mxu0 0.0
    %190 = vmatpush1.msra.mxu0 0.0
    %191 = vmatprep.subr.mxu0 0.0
    %192 = vmatpush1.msra.mxu0 0.0
    %193 = vmatprep.subr.mxu0 0.0
    %194 = vmatpush1.msra.mxu0 0.0
    %195 = vmatprep.subr.mxu0 0.0
    %196 = vmatpush1.msra.mxu0 0.0
    %197 = vmatprep.subr.mxu0 0.0
    %198 = vmatpush1.msra.mxu0 0.0
    %199 = vmatprep.subr.mxu0 0.0
    %200 = vmatpush1.msra.mxu0 0.0
    %201 = vmatprep.subr.mxu0 0.0
    %202 = vmatpush1.msra.mxu0 0.0
    %203 = vmatprep.subr.mxu0 0.0
    %204 = vmatpush1.msra.mxu0 0.0
    %205 = vmatprep.subr.mxu0 0.0
    %206 = vmatpush1.msra.mxu0 0.0
    %207 = vmatprep.subr.mxu0 0.0
    %208 = vmatpush1.msra.mxu0 0.0
    %209 = vmatprep.subr.mxu0 0.0
    %210 = vmatpush1.msra.mxu0 0.0
    %211 = vmatprep.subr.mxu0 0.0
    %212 = vmatpush1.msra.mxu0 0.0
    %213 = vmatprep.subr.mxu0 0.0
    %214 = vmatpush1.msra.mxu0 0.0
    %215 = vmatprep.subr.mxu0 0.0
    %216 = vmatpush1.msra.mxu0 0.0
    %217 = vmatprep.subr.mxu0 0.0
    %218 = vmatpush1.msra.mxu0 0.0
    %219 = vmatprep.subr.mxu0 0.0
    %220 = vmatpush1.msra.mxu0 0.0
    %221 = vmatprep.subr.mxu0 0.0
    %222 = vmatpush1.msra.mxu0 0.0
    %223 = vmatprep.subr.mxu0 0.0
    %224 = vmatpush1.msra.mxu0 0.0
    %225 = vmatprep.mubr.f32.mxu0 0.0
    %226 = vmatmul.mubr.f32.gmra.mrb[0].mxu0 %v159
    %v227 = vpop.f32.mrb[0].mxu0
    %v228 = vadd.f32 %v155, %v227
    %v229 = vpop.f32.mrb[0].mxu0
    %230 = vdwg.mxu0
    %v231 = vtanh.pop %v228
    %v232 = vsub.f32 %v231, %v55
    %v233 = vmul.f32 %v232, %v232
    %vm234 = vcmask 123904
    %v235 = vsel %vm234, %v233, 0.0
    %236 = vadd.xlane.f32.xlu0 %v235
    %v237 = vpop.xlane.xlu0 %236
    %v238 = vrot.slane %v237, 4
    %v239 = vadd.f32 %v237, %v238
    %v240 = vrot.slane %v239, 2
    %v241 = vadd.f32 %v239, %v240
    %v242 = vrot.slane %v241, 1
    %v243 = vadd.f32 %v241, %v242
    %s244 = vtos %v243
    %s245 = smul.f32 %s244, 0.5
    %v246 = vadd.f32 %v136, 1.0
    %v247 = vmul.f32 %v136, %v136
    %249 = vrot.lane.b32.xlu0 %v247, 8
    %v250 = vpop.permute.xlu0 %249
    %v252 = vsub.f32 %v246, %v250
    %v253 = vmul.f32 %v141, %v141
    %v254 = vsub.f32 %v252, %v253
    %256 = vrot.lane.b32.xlu0 %v254, 120
    %v257 = vpop.permute.xlu0 %256
    %vm259 = vcmask 58368
    %v260 = vsel %vm259, %v257, 0.0
    %261 = vadd.xlane.f32.xlu0 %v260
    %v262 = vpop.xlane.xlu0 %261
    %v263 = vrot.slane %v262, 4
    %v264 = vadd.f32 %v262, %v263
    %v265 = vrot.slane %v264, 2
    %v266 = vadd.f32 %v264, %v265
    %v267 = vrot.slane %v266, 1
    %v268 = vadd.f32 %v266, %v267
    %s269 = vtos %v268
    %s270 = smul.f32 %s269, -0.5
    %s271 = sadd.f32 %s245, %s270
    %s272 = scalar_lea.smem [#allocation8], 0
    %273 = sst [smem:[%s272]] %s271
    %274 = vst.msk [vmem:[#allocation9] sm:$0x3] %vm259, %v148
    %275 = vst.msk [vmem:[#allocation10] sm:$0x3] %vm234, %v231
    // Predicated region
    $region34: #{tpu_custom_call.1} parent=1 // pred_check
      _
    $region35: #{tpu_custom_call.1} parent=1 // pred_check_branch
      %277 = sbr.rel (0) target = $region37
    $region36: #{tpu_custom_call.1} parent=1 // pred_region
      %s279 = ssub.s32 16, 16
      %280 = vsyncadd [#allocation5], %s279
      %283 = dma.smem_to_hbm [#allocation8], 16, %s6, [#allocation5]
    $region37: #{tpu_custom_call.1} parent=1 // pred_fallthru
      _
    // Predicated region
    $region38: #{tpu_custom_call.1} parent=1 // pred_check
      _
    $region39: #{tpu_custom_call.1} parent=1 // pred_check_branch
      %285 = sbr.rel (0) target = $region41
    $region40: #{tpu_custom_call.1} parent=1 // pred_region
      %s287 = ssub.s32 32, 32
      %288 = vsyncadd [#allocation4], %s287
      %s290 = sshll.u32 [#allocation9], 4
      %s291 = int_to_ptr.vmem [resolvable:$true] %s290
      %293 = dma.vmem_to_hbm [thread:$0]  %s291, 32, %s7, [#allocation4]
    $region41: #{tpu_custom_call.1} parent=1 // pred_fallthru
      _
    // Predicated region
    $region42: #{tpu_custom_call.1} parent=1 // pred_check
      _
    $region43: #{tpu_custom_call.1} parent=1 // pred_check_branch
      %295 = sbr.rel (0) target = $region45
    $region44: #{tpu_custom_call.1} parent=1 // pred_region
      %s297 = ssub.s32 32, 32
      %298 = vsyncadd [#allocation11], %s297
      %s300 = sshll.u32 [#allocation10], 4
      %s301 = int_to_ptr.vmem [resolvable:$true] %s300
      %303 = dma.vmem_to_hbm [thread:$0]  %s301, 32, %s8, [#allocation11]
    $region45: #{tpu_custom_call.1} parent=1 // pred_fallthru
      _
    // Predicated region
    $region46: #{tpu_custom_call.1} parent=1 // pred_check
      _
    $region47: #{tpu_custom_call.1} parent=1 // pred_check_branch
      %305 = sbr.rel (0) target = $region49
    $region48: #{tpu_custom_call.1} parent=1 // pred_region
      %306 = dma.done [#allocation5], 16
    $region49: #{tpu_custom_call.1} parent=1 // pred_fallthru
      _
    // Predicated region
    $region50: #{tpu_custom_call.1} parent=1 // pred_check
      _
    $region51: #{tpu_custom_call.1} parent=1 // pred_check_branch
      %308 = sbr.rel (0) target = $region53
    $region52: #{tpu_custom_call.1} parent=1 // pred_region
      %309 = dma.done [#allocation4], 32
    $region53: #{tpu_custom_call.1} parent=1 // pred_fallthru
      _
    // Predicated region
    $region54: #{tpu_custom_call.1} parent=1 // pred_check
      _
    $region55: #{tpu_custom_call.1} parent=1 // pred_check_branch
      %311 = sbr.rel (0) target = $region57
    $region56: #{tpu_custom_call.1} parent=1 // pred_region
      %312 = dma.done [#allocation11], 32
    $region57: #{tpu_custom_call.1} parent=1 // pred_fallthru
      _
    %313 = sfence
    %314 = vsyncpa [#allocation3], 1
    %315 = vsyncpa [#allocation7], 1
    %316 = vsyncpa [#allocation4], 1
    %317 = vsyncpa [#allocation11], 1
    %318 = vsyncpa [#allocation5], 1

</llo_original>
